<compile_context>
chip_gen: v7x
topology: tpu7x:2x2x1
jax: 0.10.0
libtpu: 0.0.40
codegen_flags: <defaults>
</compile_context>

<pallas_src>
import functools

import jax
import jax.numpy as jnp
from jax.experimental import pallas as pl
from jax.experimental.pallas import tpu as pltpu


HIDDEN = 128


def _round_up(x, m):
    return ((x + m - 1) // m) * m


def discriminator_kernel(x_ref, w1_ref, b1_ref, w2_ref, b2_ref, o_ref, acc_ref,
                         *, compute_dtype):
    k = pl.program_id(1)

    @pl.when(k == 0)
    def _():
        acc_ref[...] = jnp.zeros_like(acc_ref)

    # First linear on the MXU: (tb, tk) @ (tk, H) -> f32 accumulate.
    # x streams in its native dtype; the (optional) bf16 cast happens here on
    # the VPU, hidden under the x DMA -- no wrapper-side astype HBM pass.
    x = x_ref[...].astype(compute_dtype)
    w = w1_ref[...].astype(compute_dtype)
    acc_ref[...] += jnp.dot(x, w, preferred_element_type=jnp.float32)

    @pl.when(k == pl.num_programs(1) - 1)
    def _():
        h = acc_ref[...] + b1_ref[...]            # (tb, H) + (1, H) broadcast
        h = jnp.maximum(h, 0.1 * h)               # LeakyReLU(0.1), 2 VALU ops
        # Second linear (H -> 1) is degenerate for the MXU: VPU multiply +
        # XLU lane reduce against w2 stored as a (1, H) row; b2 is an SMEM scalar.
        z = jnp.sum(h * w2_ref[...], axis=-1, keepdims=True) + b2_ref[0]
        # Sigmoid: exp + reciprocal on the EUP (free slots under HBM-bound op).
        o_ref[...] = pl.reciprocal(1.0 + jnp.exp(-z), approx=True)


def _choose_tk(F, max_tk=2048):
    """Feature-axis tile. tk == F (single K block) unless F is large and has a
    clean multiple-of-128 divisor (required by the (8,128) block constraint)."""
    if F <= max_tk:
        return F
    for tk in (2048, 1792, 1536, 1280, 1024, 768, 512, 384, 256, 128):
        if F % tk == 0:
            return tk
    # TODO(synk): mask the ragged K tail in-kernel to K-tile arbitrary F.
    return F


def _choose_tb(B, tk, H, x_itemsize, w_itemsize, block_b,
               vmem_budget=24 * 1024 * 1024):
    """Largest batch tile (multiple of 8, capped at block_b) fitting the VMEM
    budget; the 24 MiB budget stays under v7x's 32 MiB default scoped VMEM."""
    tb = _round_up(min(block_b, max(B, 8)), 8)

    def vmem_per_step(t):
        return (2 * t * tk * x_itemsize      # x tile, double-buffered
                + 2 * tk * H * w_itemsize    # w1 tile, double-buffered
                + t * H * 4                  # f32 accumulator scratch
                + 2 * t * 4                  # output tile, double-buffered
                + 4 * H * 4)                 # b1 / w2 rows

    while tb > 8 and vmem_per_step(tb) > vmem_budget:
        tb = max(8, _round_up(tb // 2, 8))
    return tb


def discriminator_forward(x, w1, b1, w2, b2, *, block_b=4096,
                          use_bf16_compute=True):
    """Forward pass of the Discriminator via a batch/feature-tiled Pallas kernel.

    x  : (B, F) float32 (or bf16)
    w1 : (F, 128), b1 : (128,)
    w2 : (128, 1), b2 : (1,)
    Returns (B, 1) float32 sigmoid scores.
    """
    B, F = x.shape
    F_w, H = w1.shape
    assert F_w == F and w2.shape == (H, 1) and b1.shape == (H,) and b2.shape == (1,)

    compute_dtype = jnp.bfloat16 if use_bf16_compute else jnp.float32

    # Weights are tiny: wrapper-side cast is negligible and halves their VMEM
    # footprint.  x is deliberately NOT cast or padded here.
    w1_c = w1.astype(compute_dtype)
    b1_2d = b1.reshape(1, H).astype(jnp.float32)
    w2_row = w2.reshape(1, H).astype(jnp.float32)   # (H,1) -> (1,H), same values
    b2_smem = b2.astype(jnp.float32)                # (1,), lives in SMEM

    tk = _choose_tk(F)
    num_k = pl.cdiv(F, tk)
    x_item = jnp.dtype(x.dtype).itemsize
    w_item = jnp.dtype(compute_dtype).itemsize
    tb = _choose_tb(B, tk, H, x_item, w_item, block_b)
    num_b = pl.cdiv(B, tb)   # >= 2 steps lets v7x shard the batch over 2 TCs

    cost = pl.CostEstimate(
        flops=2 * B * F * H + 4 * B * H,
        transcendentals=2 * B,
        bytes_accessed=B * F * x_item + num_b * F * H * w_item
        + (2 * H + 1) * 4 + B * 4,
    )

    kernel = functools.partial(discriminator_kernel, compute_dtype=compute_dtype)

    out = pl.pallas_call(
        kernel,
        out_shape=jax.ShapeDtypeStruct((B, 1), jnp.float32),
        grid=(num_b, num_k),
        in_specs=[
            pl.BlockSpec((tb, tk), lambda i, k: (i, k)),        # x: streamed
            pl.BlockSpec((tk, H), lambda i, k: (k, 0)),         # w1 tile
            pl.BlockSpec((1, H), lambda i, k: (0, 0)),          # b1: resident
            pl.BlockSpec((1, H), lambda i, k: (0, 0)),          # w2 row: resident
            pl.BlockSpec(memory_space=pltpu.MemorySpace.SMEM),  # b2 scalar
        ],
        # (tb, 1) output is only B*4 bytes total; hidden under the x DMA.
        out_specs=pl.BlockSpec((tb, 1), lambda i, k: (i, 0)),
        scratch_shapes=[pltpu.VMEM((tb, H), jnp.float32)],
        compiler_params=pltpu.CompilerParams(
            dimension_semantics=("parallel", "arbitrary"),
        ),
        cost_estimate=cost,
    )(x, w1_c, b1_2d, w2_row, b2_smem)

    return out


def init_discriminator_params(key, in_features, hidden=HIDDEN):
    """Deterministic PyTorch-style init: U(-1/sqrt(fan_in), 1/sqrt(fan_in))."""
    k1, k2, k3, k4 = jax.random.split(key, 4)
    bound1 = 1.0 / jnp.sqrt(in_features)
    w1 = jax.random.uniform(k1, (in_features, hidden), jnp.float32, -bound1, bound1)
    b1 = jax.random.uniform(k2, (hidden,), jnp.float32, -bound1, bound1)
    bound2 = 1.0 / jnp.sqrt(hidden)
    w2 = jax.random.uniform(k3, (hidden, 1), jnp.float32, -bound2, bound2)
    b2 = jax.random.uniform(k4, (1,), jnp.float32, -bound2, bound2)
    return w1, b1, w2, b2


def discriminator_reference(x, w1, b1, w2, b2):
    h = x @ w1 + b1
    h = jnp.where(h >= 0, h, 0.1 * h)
    z = h @ w2 + b2
    return jax.nn.sigmoid(z)


if __name__ == "__main__":
    key = jax.random.PRNGKey(0)
    kx, kp = jax.random.split(key)

    batch = 8
    in_features = 256  # e.g. a flattened small image

    x = jax.random.normal(kx, (batch, in_features), dtype=jnp.float32)
    w1, b1, w2, b2 = init_discriminator_params(kp, in_features)

    # Full-precision path (exact module semantics up to the approx reciprocal).
    out_f32 = discriminator_forward(x, w1, b1, w2, b2, use_bf16_compute=False)
    out_f32 = jax.block_until_ready(out_f32)
    ref_f32 = discriminator_reference(x, w1, b1, w2, b2)
    assert out_f32.shape == (batch, 1)
    assert jnp.allclose(out_f32, ref_f32, atol=2e-3, rtol=2e-3), "fp32 mismatch"

    # bf16-compute fast path: compare against a reference with bf16-rounded
    # inputs (f32 accumulate), which is what the MXU computes.
    out_bf16 = discriminator_forward(x, w1, b1, w2, b2, use_bf16_compute=True)
    out_bf16 = jax.block_until_ready(out_bf16)
    x_r = x.astype(jnp.bfloat16).astype(jnp.float32)
    w1_r = w1.astype(jnp.bfloat16).astype(jnp.float32)
    ref_bf16 = discriminator_reference(x_r, w1_r, b1, w2, b2)
    assert out_bf16.shape == (batch, 1)
    assert jnp.allclose(out_bf16, ref_bf16, atol=5e-3, rtol=5e-3), "bf16 mismatch"

    print("KERNEL_OK")
</pallas_src>

<mosaic_0001>
module attributes {stable_mosaic.version = 11 : i64} {
  func.func @discriminator_kernel(%arg0: i32, %arg1: i32, %arg2: memref<8x256xf32, #tpu.memory_space<vmem>>, %arg3: memref<256x128xf32, #tpu.memory_space<vmem>>, %arg4: memref<1x128xf32, #tpu.memory_space<vmem>>, %arg5: memref<1x128xf32, #tpu.memory_space<vmem>>, %arg6: memref<1xf32, #tpu.memory_space<smem>>, %arg7: memref<8x1xf32, #tpu.memory_space<vmem>>, %arg8: memref<8x128xf32, #tpu.memory_space<vmem>>) attributes {dimension_semantics = [#tpu.dimension_semantics<parallel>, #tpu.dimension_semantics<arbitrary>], iteration_bounds = array<i64: 1, 1>, scalar_prefetch = 0 : i64, scratch_operands = 1 : i64, tpu.core_type = #tpu.core_type<tc>, window_params = [{transform_indices = @transform_0, window_bounds = array<i64: 8, 256>}, {transform_indices = @transform_1, window_bounds = array<i64: 256, 128>}, {pipeline_mode = #tpu.pipeline_mode<synchronous>, transform_indices = @transform_2, window_bounds = array<i64: 1, 128>}, {pipeline_mode = #tpu.pipeline_mode<synchronous>, transform_indices = @transform_3, window_bounds = array<i64: 1, 128>}, {transform_indices = @transform_4, window_bounds = array<i64: 1>}, {transform_indices = @transform_5, window_bounds = array<i64: 8, 1>}]} {
    %c0_i32 = arith.constant 0 : i32
    %0 = arith.cmpi eq, %arg1, %c0_i32 : i32
    %1 = arith.extui %0 : i1 to i32
    %c0_i32_0 = arith.constant 0 : i32
    %2 = arith.cmpi ne, %1, %c0_i32_0 : i32
    scf.if %2 {
      %cst_10 = arith.constant 0.000000e+00 : f32
      %12 = vector.broadcast %cst_10 : f32 to vector<8x128xf32>
      %c0_11 = arith.constant 0 : index
      %c0_12 = arith.constant 0 : index
      %13 = vector.load %arg8[%c0_11, %c0_12] : memref<8x128xf32, #tpu.memory_space<vmem>>, vector<8x128xf32>
      tpu.vector_store %arg8[%c0_11, %c0_12], %12 {strides = array<i32>} : memref<8x128xf32, #tpu.memory_space<vmem>>, vector<8x128xf32>,
    } else {
    }
    %c0 = arith.constant 0 : index
    %c0_1 = arith.constant 0 : index
    %3 = vector.load %arg2[%c0, %c0_1] : memref<8x256xf32, #tpu.memory_space<vmem>>, vector<8x256xf32>
    %c0_2 = arith.constant 0 : index
    %c0_3 = arith.constant 0 : index
    %4 = vector.load %arg3[%c0_2, %c0_3] : memref<256x128xf32, #tpu.memory_space<vmem>>, vector<256x128xf32>
    %c0_4 = arith.constant 0 : index
    %c0_5 = arith.constant 0 : index
    %5 = vector.load %arg8[%c0_4, %c0_5] : memref<8x128xf32, #tpu.memory_space<vmem>>, vector<8x128xf32>
    %cst = arith.constant dense<0.000000e+00> : vector<8x128xf32>
    %6 = tpu.matmul %3, %4, %cst {dimension_numbers = #tpu.dot_dimension_numbers<[1], [0], [0], [1], [0, 0, 1, 1], [], []>} : vector<8x256xf32>, vector<256x128xf32>, vector<8x128xf32> -> vector<8x128xf32>
    %7 = arith.addf %5, %6 : vector<8x128xf32>
    %c0_6 = arith.constant 0 : index
    %c0_7 = arith.constant 0 : index
    %8 = vector.load %arg8[%c0_6, %c0_7] : memref<8x128xf32, #tpu.memory_space<vmem>>, vector<8x128xf32>
    tpu.vector_store %arg8[%c0_6, %c0_7], %7 {strides = array<i32>} : memref<8x128xf32, #tpu.memory_space<vmem>>, vector<8x128xf32>,
    %c0_i32_8 = arith.constant 0 : i32
    %9 = arith.cmpi eq, %arg1, %c0_i32_8 : i32
    %10 = arith.extui %9 : i1 to i32
    %c0_i32_9 = arith.constant 0 : i32
    %11 = arith.cmpi ne, %10, %c0_i32_9 : i32
    scf.if %11 {
      %c0_10 = arith.constant 0 : index
      %c0_11 = arith.constant 0 : index
      %12 = vector.load %arg8[%c0_10, %c0_11] : memref<8x128xf32, #tpu.memory_space<vmem>>, vector<8x128xf32>
      %c0_12 = arith.constant 0 : index
      %c0_13 = arith.constant 0 : index
      %13 = vector.load %arg4[%c0_12, %c0_13] : memref<1x128xf32, #tpu.memory_space<vmem>>, vector<1x128xf32>
      %14 = vector.broadcast %13 : vector<1x128xf32> to vector<8x128xf32>
      %15 = arith.addf %12, %14 : vector<8x128xf32>
      %cst_14 = arith.constant 1.000000e-01 : f32
      %16 = vector.broadcast %cst_14 : f32 to vector<8x128xf32>
      %17 = arith.mulf %16, %15 : vector<8x128xf32>
      %18 = arith.maximumf %15, %17 : vector<8x128xf32>
      %c0_15 = arith.constant 0 : index
      %c0_16 = arith.constant 0 : index
      %19 = vector.load %arg5[%c0_15, %c0_16] : memref<1x128xf32, #tpu.memory_space<vmem>>, vector<1x128xf32>
      %20 = vector.broadcast %19 : vector<1x128xf32> to vector<8x128xf32>
      %21 = arith.mulf %18, %20 : vector<8x128xf32>
      %cst_17 = arith.constant dense<0.000000e+00> : vector<8xf32>
      %22 = vector.multi_reduction <add>, %21, %cst_17 [1] : vector<8x128xf32> to vector<8xf32>
      %23 = vector.shape_cast %22 : vector<8xf32> to vector<8x1xf32>
      %c0_18 = arith.constant 0 : index
      %24 = memref.load %arg6[%c0_18] : memref<1xf32, #tpu.memory_space<smem>>
      %25 = vector.broadcast %24 : f32 to vector<8x1xf32>
      %26 = arith.addf %23, %25 : vector<8x1xf32>
      %cst_19 = arith.constant 0.000000e+00 : f32
      %27 = vector.broadcast %cst_19 : f32 to vector<8x1xf32>
      %28 = arith.subf %27, %26 : vector<8x1xf32>
      %29 = math.exp %28 : vector<8x1xf32>
      %cst_20 = arith.constant 1.000000e+00 : f32
      %30 = vector.broadcast %cst_20 : f32 to vector<8x1xf32>
      %31 = arith.addf %30, %29 : vector<8x1xf32>
      %32 = tpu.reciprocal %31 {approx = true} : vector<8x1xf32> -> vector<8x1xf32>
      %c0_21 = arith.constant 0 : index
      %c0_22 = arith.constant 0 : index
      %33 = vector.load %arg7[%c0_21, %c0_22] : memref<8x1xf32, #tpu.memory_space<vmem>>, vector<8x1xf32>
      tpu.vector_store %arg7[%c0_21, %c0_22], %32 {strides = array<i32>} : memref<8x1xf32, #tpu.memory_space<vmem>>, vector<8x1xf32>,
    } else {
    }
    return
  }
  func.func @transform_0(%arg0: i32, %arg1: i32) -> (i32, i32) {
    %c0_i32 = arith.constant 0 : i32
    return %arg0, %arg1 : i32, i32
  }
  func.func @transform_1(%arg0: i32, %arg1: i32) -> (i32, i32) {
    %c0_i32 = arith.constant 0 : i32
    %c0_i32_0 = arith.constant 0 : i32
    return %arg1, %c0_i32 : i32, i32
  }
  func.func @transform_2(%arg0: i32, %arg1: i32) -> (i32, i32) {
    %c0_i32 = arith.constant 0 : i32
    %c0_i32_0 = arith.constant 0 : i32
    %c0_i32_1 = arith.constant 0 : i32
    return %c0_i32, %c0_i32_0 : i32, i32
  }
  func.func @transform_3(%arg0: i32, %arg1: i32) -> (i32, i32) {
    %c0_i32 = arith.constant 0 : i32
    %c0_i32_0 = arith.constant 0 : i32
    %c0_i32_1 = arith.constant 0 : i32
    return %c0_i32, %c0_i32_0 : i32, i32
  }
  func.func @transform_4(%arg0: i32, %arg1: i32) -> i32 {
    %c0_i32 = arith.constant 0 : i32
    %c0_i32_0 = arith.constant 0 : i32
    return %c0_i32 : i32
  }
  func.func @transform_5(%arg0: i32, %arg1: i32) -> (i32, i32) {
    %c0_i32 = arith.constant 0 : i32
    %c0_i32_0 = arith.constant 0 : i32
    return %arg0, %c0_i32 : i32, i32
  }
}

</mosaic_0001>

<llo_original>
// kernel: tpu_custom_call.1
$region0: #{tpu_custom_call.1}
  #allocation0 [shape = 'u32[]', space=smem, size = 0x4, offset = 0x4, fixed_abs, tag = 'smem constant byte address 0x4 - core index']
  #allocation1 [shape = 'u32[144,128]{1,0:T(1,128)}', space=vmem, size = 0x12000, scoped, tag = 'internal scratch']
  #allocation2 [shape = 'f32[8,128]{1,0:T(8,128)}', space=vmem, size = 0x1000, scoped, tag = 'scratch operand']
  #allocation3 [shape = 'f32[1]{0:T(128)S(6)}', space=smem, size = 0x200, scoped, tag = 'scoped memory for tpu_custom_call.1']
  %s0 = inlined_call_operand.hbm [shape: f32[8,256], index: 0, kind: input, shape index: {}]
  %s1 = inlined_call_operand.hbm [shape: f32[256,128], index: 1, kind: input, shape index: {}]
  %s2 = inlined_call_operand.vmem [shape: f32[1,128], index: 2, kind: input, shape index: {}]
  %s3 = inlined_call_operand.vmem [shape: f32[1,128], index: 3, kind: input, shape index: {}]
  %s4 = inlined_call_operand.<no memory space> [shape: f32[1], index: 4, kind: input, shape index: {}]
  %s5 = inlined_call_operand.vmem [shape: f32[8,1], index: 5, kind: output, shape index: {}]
  %s6 = sld [smem:[#allocation0]]
  $region46: #{tpu_custom_call.1} parent=0
    _
  %s8 = ssub.s32 1, %s6
  %s9 = scalar_select 0, %s8, %s6
  %10 = sst [smem:[#allocation3]] %s4
  $region1: #{tpu_custom_call.1} parent=0
    #allocation4 [shape = 'u8[8192]{0}', space=vmem, size = 0x2000, scoped, tag = 'input window, operand 0, single buffered']
    #allocation5 [shape = 's32[1]{0}', space=sflag, size = 0x4, scoped, tag = 'scoped memory for tpu_custom_call.1']
    #allocation6 [shape = 'u8[131072]{0}', space=vmem, size = 0x20000, scoped, tag = 'input window, operand 1, single buffered']
    #allocation7 [shape = 's32[1]{0}', space=sflag, size = 0x4, scoped, tag = 'scoped memory for tpu_custom_call.1']
    %11 = vsyncpa [#allocation5], 0
    %12 = vsyncpa [#allocation7], 0
    // Predicated region
    $region2: #{tpu_custom_call.1} parent=1 // pred_check
      _
    $region3: #{tpu_custom_call.1} parent=1 // pred_check_branch
      %14 = sbr.rel (0) target = $region5
    $region4: #{tpu_custom_call.1} parent=1 // pred_region
      %s16 = ssub.s32 256, 256
      %17 = vsyncadd [#allocation5], %s16
      %s19 = sshll.u32 [#allocation4], 4
      %s20 = int_to_ptr.vmem [resolvable:$true] %s19
      %22 = dma.hbm_to_vmem [thread:$0]  %s0, 256, %s20, [#allocation5]
    $region5: #{tpu_custom_call.1} parent=1 // pred_fallthru
      _
    // Predicated region
    $region6: #{tpu_custom_call.1} parent=1 // pred_check
      _
    $region7: #{tpu_custom_call.1} parent=1 // pred_check_branch
      %24 = sbr.rel (0) target = $region9
    $region8: #{tpu_custom_call.1} parent=1 // pred_region
      %s26 = ssub.s32 4096, 4096
      %27 = vsyncadd [#allocation7], %s26
      %s28 = sshll.u32 [#allocation6], 4
      %s29 = int_to_ptr.vmem [resolvable:$true] %s28
      %34 = dma.hbm_to_vmem [thread:$0]  %s1, 4096, %s29, [#allocation7], 128, 128, 8
    $region9: #{tpu_custom_call.1} parent=1 // pred_fallthru
      _
    // Predicated region
    $region10: #{tpu_custom_call.1} parent=1 // pred_check
      _
    $region11: #{tpu_custom_call.1} parent=1 // pred_check_branch
      %36 = sbr.rel (0) target = $region13
    $region12: #{tpu_custom_call.1} parent=1 // pred_region
      _
    $region13: #{tpu_custom_call.1} parent=1 // pred_fallthru
      _
    // Predicated region
    $region14: #{tpu_custom_call.1} parent=1 // pred_check
      _
    $region15: #{tpu_custom_call.1} parent=1 // pred_check_branch
      %38 = sbr.rel (0) target = $region17
    $region16: #{tpu_custom_call.1} parent=1 // pred_region
      _
    $region17: #{tpu_custom_call.1} parent=1 // pred_fallthru
      _
    // Predicated region
    $region18: #{tpu_custom_call.1} parent=1 // pred_check
      _
    $region19: #{tpu_custom_call.1} parent=1 // pred_check_branch
      %40 = sbr.rel (0) target = $region21
    $region20: #{tpu_custom_call.1} parent=1 // pred_region
      _
    $region21: #{tpu_custom_call.1} parent=1 // pred_fallthru
      _
    // Predicated region
    $region22: #{tpu_custom_call.1} parent=1 // pred_check
      _
    $region23: #{tpu_custom_call.1} parent=1 // pred_check_branch
      %42 = sbr.rel (0) target = $region25
    $region24: #{tpu_custom_call.1} parent=1 // pred_region
      %43 = dma.done [#allocation5], 256
    $region25: #{tpu_custom_call.1} parent=1 // pred_fallthru
      _
    // Predicated region
    $region26: #{tpu_custom_call.1} parent=1 // pred_check
      _
    $region27: #{tpu_custom_call.1} parent=1 // pred_check_branch
      %45 = sbr.rel (0) target = $region29
    $region28: #{tpu_custom_call.1} parent=1 // pred_region
      %46 = dma.done [#allocation7], 4096
    $region29: #{tpu_custom_call.1} parent=1 // pred_fallthru
      _
    %p47 = scmp.eq.s32.totalorder 0, 0
    // Predicated region
    $region30: #{tpu_custom_call.1} parent=1 // pred_check
      %p48 = pneg %p47
    $region31: #{tpu_custom_call.1} parent=1 // pred_check_branch
      %50 = sbr.rel (%p48) target = $region33
    $region32: #{tpu_custom_call.1} parent=1 // pred_region
      %51 = vst [vmem:[#allocation2] sm:$0xff] 0.0
    $region33: #{tpu_custom_call.1} parent=1 // pred_fallthru
      _
    %v52 = vld [vmem:[#allocation4] sm:$0xff]
    %v53 = vld [vmem:[#allocation4 + $0x8] sm:$0xff]
    %v54 = vld [vmem:[#allocation6] sm:$0xff]
    %v55 = vld [vmem:[#allocation6 + $0x8] sm:$0xff]
    %v56 = vld [vmem:[#allocation6 + $0x10] sm:$0xff]
    %v57 = vld [vmem:[#allocation6 + $0x18] sm:$0xff]
    %v58 = vld [vmem:[#allocation6 + $0x20] sm:$0xff]
    %v59 = vld [vmem:[#allocation6 + $0x28] sm:$0xff]
    %v60 = vld [vmem:[#allocation6 + $0x30] sm:$0xff]
    %v61 = vld [vmem:[#allocation6 + $0x38] sm:$0xff]
    %v62 = vld [vmem:[#allocation6 + $0x40] sm:$0xff]
    %v63 = vld [vmem:[#allocation6 + $0x48] sm:$0xff]
    %v64 = vld [vmem:[#allocation6 + $0x50] sm:$0xff]
    %v65 = vld [vmem:[#allocation6 + $0x58] sm:$0xff]
    %v66 = vld [vmem:[#allocation6 + $0x60] sm:$0xff]
    %v67 = vld [vmem:[#allocation6 + $0x68] sm:$0xff]
    %v68 = vld [vmem:[#allocation6 + $0x70] sm:$0xff]
    %v69 = vld [vmem:[#allocation6 + $0x78] sm:$0xff]
    %v70 = vld [vmem:[#allocation6 + $0x80] sm:$0xff]
    %v71 = vld [vmem:[#allocation6 + $0x88] sm:$0xff]
    %v72 = vld [vmem:[#allocation6 + $0x90] sm:$0xff]
    %v73 = vld [vmem:[#allocation6 + $0x98] sm:$0xff]
    %v74 = vld [vmem:[#allocation6 + $0xa0] sm:$0xff]
    %v75 = vld [vmem:[#allocation6 + $0xa8] sm:$0xff]
    %v76 = vld [vmem:[#allocation6 + $0xb0] sm:$0xff]
    %v77 = vld [vmem:[#allocation6 + $0xb8] sm:$0xff]
    %v78 = vld [vmem:[#allocation6 + $0xc0] sm:$0xff]
    %v79 = vld [vmem:[#allocation6 + $0xc8] sm:$0xff]
    %v80 = vld [vmem:[#allocation6 + $0xd0] sm:$0xff]
    %v81 = vld [vmem:[#allocation6 + $0xd8] sm:$0xff]
    %v82 = vld [vmem:[#allocation6 + $0xe0] sm:$0xff]
    %v83 = vld [vmem:[#allocation6 + $0xe8] sm:$0xff]
    %v84 = vld [vmem:[#allocation6 + $0xf0] sm:$0xff]
    %v85 = vld [vmem:[#allocation6 + $0xf8] sm:$0xff]
    %v86 = vld [vmem:[#allocation2] sm:$0xff]
    %87 = vmatprep.subr.mxu0 0.0
    %88 = vmatpush1.msra.mxu0 %v54
    %89 = vmatprep.subr.mxu0 0.0
    %90 = vmatpush1.msra.mxu0 %v55
    %91 = vmatprep.subr.mxu0 0.0
    %92 = vmatpush1.msra.mxu0 %v56
    %93 = vmatprep.subr.mxu0 0.0
    %94 = vmatpush1.msra.mxu0 %v57
    %95 = vmatprep.subr.mxu0 0.0
    %96 = vmatpush1.msra.mxu0 %v58
    %97 = vmatprep.subr.mxu0 0.0
    %98 = vmatpush1.msra.mxu0 %v59
    %99 = vmatprep.subr.mxu0 0.0
    %100 = vmatpush1.msra.mxu0 %v60
    %101 = vmatprep.subr.mxu0 0.0
    %102 = vmatpush1.msra.mxu0 %v61
    %103 = vmatprep.subr.mxu0 0.0
    %104 = vmatpush1.msra.mxu0 %v62
    %105 = vmatprep.subr.mxu0 0.0
    %106 = vmatpush1.msra.mxu0 %v63
    %107 = vmatprep.subr.mxu0 0.0
    %108 = vmatpush1.msra.mxu0 %v64
    %109 = vmatprep.subr.mxu0 0.0
    %110 = vmatpush1.msra.mxu0 %v65
    %111 = vmatprep.subr.mxu0 0.0
    %112 = vmatpush1.msra.mxu0 %v66
    %113 = vmatprep.subr.mxu0 0.0
    %114 = vmatpush1.msra.mxu0 %v67
    %115 = vmatprep.subr.mxu0 0.0
    %116 = vmatpush1.msra.mxu0 %v68
    %117 = vmatprep.subr.mxu0 0.0
    %118 = vmatpush1.msra.mxu0 %v69
    %119 = vmatprep.subr.mxu0 0.0
    %120 = vmatpush1.msra.mxu0 %v70
    %121 = vmatprep.subr.mxu0 0.0
    %122 = vmatpush1.msra.mxu0 %v71
    %123 = vmatprep.subr.mxu0 0.0
    %124 = vmatpush1.msra.mxu0 %v72
    %125 = vmatprep.subr.mxu0 0.0
    %126 = vmatpush1.msra.mxu0 %v73
    %127 = vmatprep.subr.mxu0 0.0
    %128 = vmatpush1.msra.mxu0 %v74
    %129 = vmatprep.subr.mxu0 0.0
    %130 = vmatpush1.msra.mxu0 %v75
    %131 = vmatprep.subr.mxu0 0.0
    %132 = vmatpush1.msra.mxu0 %v76
    %133 = vmatprep.subr.mxu0 0.0
    %134 = vmatpush1.msra.mxu0 %v77
    %135 = vmatprep.subr.mxu0 0.0
    %136 = vmatpush1.msra.mxu0 %v78
    %137 = vmatprep.subr.mxu0 0.0
    %138 = vmatpush1.msra.mxu0 %v79
    %139 = vmatprep.subr.mxu0 0.0
    %140 = vmatpush1.msra.mxu0 %v80
    %141 = vmatprep.subr.mxu0 0.0
    %142 = vmatpush1.msra.mxu0 %v81
    %143 = vmatprep.subr.mxu0 0.0
    %144 = vmatpush1.msra.mxu0 %v82
    %145 = vmatprep.subr.mxu0 0.0
    %146 = vmatpush1.msra.mxu0 %v83
    %147 = vmatprep.subr.mxu0 0.0
    %148 = vmatpush1.msra.mxu0 %v84
    %149 = vmatprep.subr.mxu0 0.0
    %150 = vmatpush1.msra.mxu0 %v85
    %151 = vmatprep.mubr.f32.mxu0 %v53
    %152 = vmatmul.mubr.f32.gmra.mrb[0].mxu0 %v52
    %v153 = vpop.f32.mrb[0].mxu0
    %v154 = vadd.f32 0.0, %v153
    %v155 = vpop.f32.mrb[0].mxu0
    %156 = vdwg.mxu0
    %v157 = vadd.f32 %v86, %v154
    %158 = vst [vmem:[#allocation2] sm:$0xff] %v157
    // Predicated region
    $region34: #{tpu_custom_call.1} parent=1 // pred_check
      %p159 = pneg %p47
    $region35: #{tpu_custom_call.1} parent=1 // pred_check_branch
      %161 = sbr.rel (%p159) target = $region37
    $region36: #{tpu_custom_call.1} parent=1 // pred_region
      %v162 = vld [vmem:[#allocation2] sm:$0xff]
      %v163 = vld [vmem:[%s2] sm:$0x1]
      %v165 = vlaneseq
      %v166 = vshrl.u32 %v165, 7
      %v167 = vsub.s32 0, %v166
      %v168 = vrot.slane %v163, %v167
      %v170 = vadd.f32 %v162, %v168
      %v171 = vmul.f32 %v170, 0.1
      %v172 = vmax.f32 %v170, %v171
      %v173 = vld [vmem:[%s3] sm:$0x1]
      %v175 = vlaneseq
      %v176 = vshrl.u32 %v175, 7
      %v177 = vsub.s32 0, %v176
      %v178 = vrot.slane %v173, %v177
      %v180 = vmul.f32 %v172, %v178
      %181 = vadd.xlane.f32.xlu0 %v180
      %v182 = vpop.xlane.xlu0 %181
      %s183 = sld [smem:[#allocation3]]
      %v184 = vstv %s183
      %v185 = vadd.f32 %v182, %v184
      %v186 = vsub.f32 0.0, %v185
      %v187 = vmul.f32 %v186, 1.442695
      %v188 = vpow.pop %v187
      %v189 = vadd.f32 %v188, 1.0
      %v190 = vrcp.pop %v189
      %vm191 = vcmask 7168
      %192 = vst.msk [vmem:[%s5] sm:$0xff] %vm191, %v190
    $region37: #{tpu_custom_call.1} parent=1 // pred_fallthru
      _
    // Predicated region
    $region38: #{tpu_custom_call.1} parent=1 // pred_check
      _
    $region39: #{tpu_custom_call.1} parent=1 // pred_check_branch
      %194 = sbr.rel (0) target = $region41
    $region40: #{tpu_custom_call.1} parent=1 // pred_region
      _
    $region41: #{tpu_custom_call.1} parent=1 // pred_fallthru
      _
    // Predicated region
    $region42: #{tpu_custom_call.1} parent=1 // pred_check
      _
    $region43: #{tpu_custom_call.1} parent=1 // pred_check_branch
      %196 = sbr.rel (0) target = $region45
    $region44: #{tpu_custom_call.1} parent=1 // pred_region
      _
    $region45: #{tpu_custom_call.1} parent=1 // pred_fallthru
      _
    %197 = vsyncpa [#allocation5], 1
    %198 = vsyncpa [#allocation7], 1

</llo_original>
